<compile_context>
chip_gen: v5e
topology: v5e:2x2
jax: 0.10.0
libtpu: 0.0.40
codegen_flags: <defaults>
</compile_context>

<pallas_src>
import functools

import jax
import jax.numpy as jnp
from jax.experimental import pallas as pl
from jax.experimental.pallas import tpu as pltpu


def _round_up(n, m):
    return (n + m - 1) // m * m


def _dqn_kernel(x_ref, w1_ref, b1_ref, w2_ref, b2_ref, w3_ref, b3_ref,
                q_ref, act_ref):
    # x_ref: (I, tb) bf16 -- batch on the 128-lane axis.
    x = x_ref[...]

    # Layer 1: (H, I) @ (I, tb) -> (H, tb); bf16 MXU matmul, f32 accumulation.
    h1 = jnp.dot(w1_ref[...], x, preferred_element_type=jnp.float32)
    h1 = jnp.maximum(h1 + b1_ref[...], 0.0)          # bias + ReLU in f32
    h1 = h1.astype(jnp.bfloat16)

    # Layer 2: (H, H) @ (H, tb) -> (H, tb).
    h2 = jnp.dot(w2_ref[...], h1, preferred_element_type=jnp.float32)
    h2 = jnp.maximum(h2 + b2_ref[...], 0.0)
    h2 = h2.astype(jnp.bfloat16)

    # Layer 3 (no activation): (O, H) @ (H, tb) -> (O, tb).
    q = jnp.dot(w3_ref[...], h2, preferred_element_type=jnp.float32)
    q = q + b3_ref[...]
    q_ref[...] = q.astype(q_ref.dtype)                # lane-dense store

    # Fused greedy action: first argmax over the action (sublane) axis.
    n_act = q.shape[0]
    row = jax.lax.broadcasted_iota(jnp.int32, q.shape, 0)
    qmax = jnp.max(q, axis=0, keepdims=True)
    first_best = jnp.min(jnp.where(q == qmax, row, n_act),
                         axis=0, keepdims=True)
    act_ref[...] = first_best.astype(jnp.int32)


def prepare_params(w1, b1, w2, b2, w3, b3):
    """One-time (init-time) dtype/layout prep.

    Weights keep the PyTorch nn.Linear (out_features, in_features) layout --
    no transposes, ever.  Biases become (out, 1) f32 columns so they
    broadcast over the lane (batch) axis inside the kernel.
    """
    as_w = lambda w: jnp.asarray(w, dtype=jnp.bfloat16)
    as_b = lambda b: jnp.asarray(b, dtype=jnp.float32).reshape(-1, 1)
    return (as_w(w1), as_b(b1), as_w(w2), as_b(b2), as_w(w3), as_b(b3))


@functools.partial(jax.jit, static_argnames=("batch_tile", "return_actions"))
def dqn_forward(x, params, *, batch_tile=1024, return_actions=False):
    """x: (B, input_size) float; params from prepare_params (PyTorch layout)."""
    w1, b1, w2, b2, w3, b3 = params
    B, I = x.shape
    H = w1.shape[0]
    O = w3.shape[0]

    # Feature-major view of the batch: (I, B), batch on the lane axis.
    x_t = x.T.astype(jnp.bfloat16)

    # Batch tile: full extent for small B (zero padding), otherwise a
    # lane-aligned (multiple-of-128) tile; the tail block is masked, so B is
    # never rounded up to a tile multiple.  Multiple steps for large B feed
    # both TensorCores on v7x via the "parallel" grid axis.
    if B <= batch_tile:
        tb = B
    else:
        tb = _round_up(min(batch_tile, B), 128)
    grid = (pl.cdiv(B, tb),)

    q_t, act_t = pl.pallas_call(
        _dqn_kernel,
        out_shape=(jax.ShapeDtypeStruct((O, B), jnp.float32),
                   jax.ShapeDtypeStruct((1, B), jnp.int32)),
        grid_spec=pltpu.PrefetchScalarGridSpec(
            num_scalar_prefetch=0,
            grid=grid,
            in_specs=[
                pl.BlockSpec((I, tb), lambda i: (0, i)),   # x tile (per step)
                pl.BlockSpec((H, I), lambda i: (0, 0)),    # W1 (VMEM-resident)
                pl.BlockSpec((H, 1), lambda i: (0, 0)),    # b1
                pl.BlockSpec((H, H), lambda i: (0, 0)),    # W2
                pl.BlockSpec((H, 1), lambda i: (0, 0)),    # b2
                pl.BlockSpec((O, H), lambda i: (0, 0)),    # W3
                pl.BlockSpec((O, 1), lambda i: (0, 0)),    # b3
            ],
            out_specs=[
                pl.BlockSpec((O, tb), lambda i: (0, i)),   # Q-values, lane-dense
                pl.BlockSpec((1, tb), lambda i: (0, i)),   # greedy actions
            ],
        ),
        compiler_params=pltpu.CompilerParams(
            dimension_semantics=("parallel",)),
    )(x_t, w1, b1, w2, b2, w3, b3)

    q = q_t.T                          # (B, O); tiny, fused into the same jit
    if return_actions:
        return q, act_t[0]
    return q


if __name__ == "__main__":
    # Small shapes consistent with the module's forward.
    B = 2           # batch (acting path)
    INPUT = 16      # input_size
    HIDDEN = 32     # hidden_size
    OUTPUT = 8      # output_size (number of actions)

    key = jax.random.PRNGKey(0)
    kx, kbig, k1, k2, k3, k4, k5, k6 = jax.random.split(key, 8)

    def linear_init(kw, kb, fan_out, fan_in):
        # PyTorch nn.Linear default init, layout (out_features, in_features).
        bound = 1.0 / (fan_in ** 0.5)
        w = jax.random.uniform(kw, (fan_out, fan_in), minval=-bound,
                               maxval=bound, dtype=jnp.float32)
        b = jax.random.uniform(kb, (fan_out,), minval=-bound, maxval=bound,
                               dtype=jnp.float32)
        return w, b

    x = jax.random.normal(kx, (B, INPUT), dtype=jnp.float32)
    w1, b1 = linear_init(k1, k2, HIDDEN, INPUT)
    w2, b2 = linear_init(k3, k4, HIDDEN, HIDDEN)
    w3, b3 = linear_init(k5, k6, OUTPUT, HIDDEN)

    # Init-time layout/dtype prep (outside the per-step forward).
    params = prepare_params(w1, b1, w2, b2, w3, b3)

    # Pure f32 reference (kernel uses bf16 operands + f32 accumulation).
    def ref(xf):
        h1 = jnp.maximum(xf @ w1.T + b1, 0.0)
        h2 = jnp.maximum(h1 @ w2.T + b2, 0.0)
        return h2 @ w3.T + b3

    # Acting path: tiny batch, fused argmax.
    q, actions = dqn_forward(x, params, return_actions=True)
    jax.block_until_ready((q, actions))
    assert q.shape == (B, OUTPUT), "Q shape mismatch"
    assert actions.shape == (B,), "actions shape mismatch"
    assert jnp.allclose(q, ref(x), atol=5e-2, rtol=5e-2), "Q mismatch (acting)"
    assert jnp.array_equal(actions, jnp.argmax(q, axis=-1)), "argmax mismatch"

    # Large-batch path: multi-step grid with a masked tail block (300 = 2*128 + 44).
    B_big = 300
    x_big = jax.random.normal(kbig, (B_big, INPUT), dtype=jnp.float32)
    q_big = dqn_forward(x_big, params, batch_tile=128)
    jax.block_until_ready(q_big)
    assert q_big.shape == (B_big, OUTPUT), "Q shape mismatch (batched)"
    assert jnp.allclose(q_big, ref(x_big), atol=5e-2, rtol=5e-2), \
        "Q mismatch (batched path)"

    print("KERNEL_OK")
</pallas_src>

<mosaic_0001>
module attributes {stable_mosaic.version = 11 : i64} {
  func.func @_dqn_kernel(%arg0: i32, %arg1: memref<16x2xbf16, #tpu.memory_space<vmem>>, %arg2: memref<32x16xbf16, #tpu.memory_space<vmem>>, %arg3: memref<32x1xf32, #tpu.memory_space<vmem>>, %arg4: memref<32x32xbf16, #tpu.memory_space<vmem>>, %arg5: memref<32x1xf32, #tpu.memory_space<vmem>>, %arg6: memref<8x32xbf16, #tpu.memory_space<vmem>>, %arg7: memref<8x1xf32, #tpu.memory_space<vmem>>, %arg8: memref<8x2xf32, #tpu.memory_space<vmem>>, %arg9: memref<1x2xi32, #tpu.memory_space<vmem>>) attributes {dimension_semantics = [#tpu.dimension_semantics<parallel>], iteration_bounds = array<i64: 1>, scalar_prefetch = 0 : i64, scratch_operands = 0 : i64, tpu.core_type = #tpu.core_type<tc>, window_params = [{transform_indices = @transform_0, window_bounds = array<i64: 16, 2>}, {pipeline_mode = #tpu.pipeline_mode<synchronous>, transform_indices = @transform_1, window_bounds = array<i64: 32, 16>}, {pipeline_mode = #tpu.pipeline_mode<synchronous>, transform_indices = @transform_2, window_bounds = array<i64: 32, 1>}, {pipeline_mode = #tpu.pipeline_mode<synchronous>, transform_indices = @transform_3, window_bounds = array<i64: 32, 32>}, {pipeline_mode = #tpu.pipeline_mode<synchronous>, transform_indices = @transform_4, window_bounds = array<i64: 32, 1>}, {pipeline_mode = #tpu.pipeline_mode<synchronous>, transform_indices = @transform_5, window_bounds = array<i64: 8, 32>}, {pipeline_mode = #tpu.pipeline_mode<synchronous>, transform_indices = @transform_6, window_bounds = array<i64: 8, 1>}, {transform_indices = @transform_7, window_bounds = array<i64: 8, 2>}, {transform_indices = @transform_8, window_bounds = array<i64: 1, 2>}]} {
    %c0 = arith.constant 0 : index
    %c0_0 = arith.constant 0 : index
    %0 = vector.load %arg1[%c0, %c0_0] : memref<16x2xbf16, #tpu.memory_space<vmem>>, vector<16x2xbf16>
    %c0_1 = arith.constant 0 : index
    %c0_2 = arith.constant 0 : index
    %1 = vector.load %arg2[%c0_1, %c0_2] : memref<32x16xbf16, #tpu.memory_space<vmem>>, vector<32x16xbf16>
    %cst = arith.constant dense<0.000000e+00> : vector<32x2xf32>
    %2 = tpu.matmul %1, %0, %cst {dimension_numbers = #tpu.dot_dimension_numbers<[1], [0], [0], [1], [0, 0, 1, 1], [], []>} : vector<32x16xbf16>, vector<16x2xbf16>, vector<32x2xf32> -> vector<32x2xf32>
    %c0_3 = arith.constant 0 : index
    %c0_4 = arith.constant 0 : index
    %3 = vector.load %arg3[%c0_3, %c0_4] : memref<32x1xf32, #tpu.memory_space<vmem>>, vector<32x1xf32>
    %4 = vector.broadcast %3 : vector<32x1xf32> to vector<32x2xf32>
    %5 = arith.addf %2, %4 : vector<32x2xf32>
    %cst_5 = arith.constant 0.000000e+00 : f32
    %6 = vector.broadcast %cst_5 : f32 to vector<32x2xf32>
    %7 = arith.maximumf %5, %6 : vector<32x2xf32>
    %8 = arith.truncf %7 : vector<32x2xf32> to vector<32x2xbf16>
    %c0_6 = arith.constant 0 : index
    %c0_7 = arith.constant 0 : index
    %9 = vector.load %arg4[%c0_6, %c0_7] : memref<32x32xbf16, #tpu.memory_space<vmem>>, vector<32x32xbf16>
    %cst_8 = arith.constant dense<0.000000e+00> : vector<32x2xf32>
    %10 = tpu.matmul %9, %8, %cst_8 {dimension_numbers = #tpu.dot_dimension_numbers<[1], [0], [0], [1], [0, 0, 1, 1], [], []>} : vector<32x32xbf16>, vector<32x2xbf16>, vector<32x2xf32> -> vector<32x2xf32>
    %c0_9 = arith.constant 0 : index
    %c0_10 = arith.constant 0 : index
    %11 = vector.load %arg5[%c0_9, %c0_10] : memref<32x1xf32, #tpu.memory_space<vmem>>, vector<32x1xf32>
    %12 = vector.broadcast %11 : vector<32x1xf32> to vector<32x2xf32>
    %13 = arith.addf %10, %12 : vector<32x2xf32>
    %cst_11 = arith.constant 0.000000e+00 : f32
    %14 = vector.broadcast %cst_11 : f32 to vector<32x2xf32>
    %15 = arith.maximumf %13, %14 : vector<32x2xf32>
    %16 = arith.truncf %15 : vector<32x2xf32> to vector<32x2xbf16>
    %c0_12 = arith.constant 0 : index
    %c0_13 = arith.constant 0 : index
    %17 = vector.load %arg6[%c0_12, %c0_13] : memref<8x32xbf16, #tpu.memory_space<vmem>>, vector<8x32xbf16>
    %cst_14 = arith.constant dense<0.000000e+00> : vector<8x2xf32>
    %18 = tpu.matmul %17, %16, %cst_14 {dimension_numbers = #tpu.dot_dimension_numbers<[1], [0], [0], [1], [0, 0, 1, 1], [], []>} : vector<8x32xbf16>, vector<32x2xbf16>, vector<8x2xf32> -> vector<8x2xf32>
    %c0_15 = arith.constant 0 : index
    %c0_16 = arith.constant 0 : index
    %19 = vector.load %arg7[%c0_15, %c0_16] : memref<8x1xf32, #tpu.memory_space<vmem>>, vector<8x1xf32>
    %20 = vector.broadcast %19 : vector<8x1xf32> to vector<8x2xf32>
    %21 = arith.addf %18, %20 : vector<8x2xf32>
    %c0_17 = arith.constant 0 : index
    %c0_18 = arith.constant 0 : index
    %22 = vector.load %arg8[%c0_17, %c0_18] : memref<8x2xf32, #tpu.memory_space<vmem>>, vector<8x2xf32>
    tpu.vector_store %arg8[%c0_17, %c0_18], %21 {strides = array<i32>} : memref<8x2xf32, #tpu.memory_space<vmem>>, vector<8x2xf32>,
    %23 = tpu.iota {dimensions = array<i32: 0>} : vector<8x2xi32>
    %cst_19 = arith.constant dense<0xFF800000> : vector<2xf32>
    %24 = vector.multi_reduction <maximumf>, %21, %cst_19 [0] : vector<8x2xf32> to vector<2xf32>
    %25 = vector.shape_cast %24 : vector<2xf32> to vector<1x2xf32>
    %26 = vector.broadcast %25 : vector<1x2xf32> to vector<8x2xf32>
    %27 = arith.cmpf oeq, %21, %26 : vector<8x2xf32>
    %c8_i32 = arith.constant 8 : i32
    %28 = vector.broadcast %c8_i32 : i32 to vector<8x2xi32>
    %29 = arith.select %27, %23, %28 : vector<8x2xi1>, vector<8x2xi32>
    %cst_20 = arith.constant dense<2147483647> : vector<2xi32>
    %30 = vector.multi_reduction <minsi>, %29, %cst_20 [0] : vector<8x2xi32> to vector<2xi32>
    %31 = vector.shape_cast %30 : vector<2xi32> to vector<1x2xi32>
    %c0_21 = arith.constant 0 : index
    %c0_22 = arith.constant 0 : index
    %32 = vector.load %arg9[%c0_21, %c0_22] : memref<1x2xi32, #tpu.memory_space<vmem>>, vector<1x2xi32>
    tpu.vector_store %arg9[%c0_21, %c0_22], %31 {strides = array<i32>} : memref<1x2xi32, #tpu.memory_space<vmem>>, vector<1x2xi32>,
    return
  }
  func.func @transform_0(%arg0: i32) -> (i32, i32) {
    %c0_i32 = arith.constant 0 : i32
    %c0_i32_0 = arith.constant 0 : i32
    return %c0_i32, %arg0 : i32, i32
  }
  func.func @transform_1(%arg0: i32) -> (i32, i32) {
    %c0_i32 = arith.constant 0 : i32
    %c0_i32_0 = arith.constant 0 : i32
    %c0_i32_1 = arith.constant 0 : i32
    return %c0_i32, %c0_i32_0 : i32, i32
  }
  func.func @transform_2(%arg0: i32) -> (i32, i32) {
    %c0_i32 = arith.constant 0 : i32
    %c0_i32_0 = arith.constant 0 : i32
    %c0_i32_1 = arith.constant 0 : i32
    return %c0_i32, %c0_i32_0 : i32, i32
  }
  func.func @transform_3(%arg0: i32) -> (i32, i32) {
    %c0_i32 = arith.constant 0 : i32
    %c0_i32_0 = arith.constant 0 : i32
    %c0_i32_1 = arith.constant 0 : i32
    return %c0_i32, %c0_i32_0 : i32, i32
  }
  func.func @transform_4(%arg0: i32) -> (i32, i32) {
    %c0_i32 = arith.constant 0 : i32
    %c0_i32_0 = arith.constant 0 : i32
    %c0_i32_1 = arith.constant 0 : i32
    return %c0_i32, %c0_i32_0 : i32, i32
  }
  func.func @transform_5(%arg0: i32) -> (i32, i32) {
    %c0_i32 = arith.constant 0 : i32
    %c0_i32_0 = arith.constant 0 : i32
    %c0_i32_1 = arith.constant 0 : i32
    return %c0_i32, %c0_i32_0 : i32, i32
  }
  func.func @transform_6(%arg0: i32) -> (i32, i32) {
    %c0_i32 = arith.constant 0 : i32
    %c0_i32_0 = arith.constant 0 : i32
    %c0_i32_1 = arith.constant 0 : i32
    return %c0_i32, %c0_i32_0 : i32, i32
  }
  func.func @transform_7(%arg0: i32) -> (i32, i32) {
    %c0_i32 = arith.constant 0 : i32
    %c0_i32_0 = arith.constant 0 : i32
    return %c0_i32, %arg0 : i32, i32
  }
  func.func @transform_8(%arg0: i32) -> (i32, i32) {
    %c0_i32 = arith.constant 0 : i32
    %c0_i32_0 = arith.constant 0 : i32
    return %c0_i32, %arg0 : i32, i32
  }
}

</mosaic_0001>

<llo_original>
// kernel: dqn_forward.1
$region0: #{dqn_forward.1}
  #allocation0 [shape = 'u32[]', space=smem, size = 0x4, offset = 0x4, fixed_abs, tag = 'smem constant byte address 0x4 - core index']
  #allocation1 [shape = 'u32[72,128]{1,0:T(1,128)}', space=vmem, size = 0x9000, scoped, tag = 'internal scratch']
  %s0 = inlined_call_operand.vmem [shape: bf16[16,2], index: 0, kind: input, shape index: {}]
  %s1 = inlined_call_operand.vmem [shape: bf16[32,16], index: 1, kind: input, shape index: {}]
  %s2 = inlined_call_operand.vmem [shape: f32[32,1], index: 2, kind: input, shape index: {}]
  %s3 = inlined_call_operand.vmem [shape: bf16[32,32], index: 3, kind: input, shape index: {}]
  %s4 = inlined_call_operand.vmem [shape: f32[32,1], index: 4, kind: input, shape index: {}]
  %s5 = inlined_call_operand.vmem [shape: bf16[8,32], index: 5, kind: input, shape index: {}]
  %s6 = inlined_call_operand.vmem [shape: f32[8,1], index: 6, kind: input, shape index: {}]
  %s7 = inlined_call_operand.vmem [shape: f32[8,2], index: 7, kind: output, shape index: {0}]
  %s8 = inlined_call_operand.hbm [shape: s32[1,2], index: 8, kind: output, shape index: {1}]
  %9 = xla_tuple %s7, %s8
  %s10 = sld [smem:[#allocation0]]
  $region46: #{dqn_forward.1} parent=0
    _
  %s12 = ssub.s32 1, %s10
  %s13 = scalar_select 0, %s12, %s10
  $region1: #{dqn_forward.1} parent=0
    #allocation2 [shape = 'u8[512]{0}', space=vmem, size = 0x400, scoped, tag = 'output window, operand 1, single buffered']
    #allocation3 [shape = 's32[1]{0}', space=sflag, size = 0x4, scoped, tag = 'scoped memory for dqn_forward.1']
    %14 = vsyncpa [#allocation3], 0
    // Predicated region
    $region2: #{dqn_forward.1} parent=1 // pred_check
      _
    $region3: #{dqn_forward.1} parent=1 // pred_check_branch
      %16 = sbr.rel (0) target = $region5
    $region4: #{dqn_forward.1} parent=1 // pred_region
      _
    $region5: #{dqn_forward.1} parent=1 // pred_fallthru
      _
    // Predicated region
    $region6: #{dqn_forward.1} parent=1 // pred_check
      _
    $region7: #{dqn_forward.1} parent=1 // pred_check_branch
      %18 = sbr.rel (0) target = $region9
    $region8: #{dqn_forward.1} parent=1 // pred_region
      _
    $region9: #{dqn_forward.1} parent=1 // pred_fallthru
      _
    // Predicated region
    $region10: #{dqn_forward.1} parent=1 // pred_check
      _
    $region11: #{dqn_forward.1} parent=1 // pred_check_branch
      %20 = sbr.rel (0) target = $region13
    $region12: #{dqn_forward.1} parent=1 // pred_region
      _
    $region13: #{dqn_forward.1} parent=1 // pred_fallthru
      _
    // Predicated region
    $region14: #{dqn_forward.1} parent=1 // pred_check
      _
    $region15: #{dqn_forward.1} parent=1 // pred_check_branch
      %22 = sbr.rel (0) target = $region17
    $region16: #{dqn_forward.1} parent=1 // pred_region
      _
    $region17: #{dqn_forward.1} parent=1 // pred_fallthru
      _
    // Predicated region
    $region18: #{dqn_forward.1} parent=1 // pred_check
      _
    $region19: #{dqn_forward.1} parent=1 // pred_check_branch
      %24 = sbr.rel (0) target = $region21
    $region20: #{dqn_forward.1} parent=1 // pred_region
      _
    $region21: #{dqn_forward.1} parent=1 // pred_fallthru
      _
    // Predicated region
    $region22: #{dqn_forward.1} parent=1 // pred_check
      _
    $region23: #{dqn_forward.1} parent=1 // pred_check_branch
      %26 = sbr.rel (0) target = $region25
    $region24: #{dqn_forward.1} parent=1 // pred_region
      _
    $region25: #{dqn_forward.1} parent=1 // pred_fallthru
      _
    // Predicated region
    $region26: #{dqn_forward.1} parent=1 // pred_check
      _
    $region27: #{dqn_forward.1} parent=1 // pred_check_branch
      %28 = sbr.rel (0) target = $region29
    $region28: #{dqn_forward.1} parent=1 // pred_region
      _
    $region29: #{dqn_forward.1} parent=1 // pred_fallthru
      _
    %v30 = vld [vmem:[%s0] sm:$0xf]
    %v31 = vld [vmem:[%s0 + $0x4] sm:$0xf]
    %v32 = vld [vmem:[%s1] sm:$0xf]
    %v33 = vld [vmem:[%s1 + $0x4] sm:$0xf]
    %v34 = vld [vmem:[%s1 + $0x8] sm:$0xf]
    %v35 = vld [vmem:[%s1 + $0xc] sm:$0xf]
    %v36 = vld [vmem:[%s2] sm:$0xff]
    %v37 = vld [vmem:[%s2 + $0x8] sm:$0xff]
    %v38 = vld [vmem:[%s2 + $0x10] sm:$0xff]
    %v39 = vld [vmem:[%s2 + $0x18] sm:$0xff]
    %41 = vset.pattern.permute.xlu0 0
    %42 = vperm.xlu0 %41, %v36
    %v43 = vpop.permute.xlu0 %42
    %46 = vset.pattern.permute.xlu0 0
    %47 = vperm.xlu0 %46, %v37
    %v48 = vpop.permute.xlu0 %47
    %51 = vset.pattern.permute.xlu0 0
    %52 = vperm.xlu0 %51, %v38
    %v53 = vpop.permute.xlu0 %52
    %56 = vset.pattern.permute.xlu0 0
    %57 = vperm.xlu0 %56, %v39
    %v58 = vpop.permute.xlu0 %57
    %v64 = vunpack.c.l.b16 %v32
    %v65 = vunpack.c.l.b16 %v33
    %v66 = vunpack.c.l.b16 %v34
    %v67 = vunpack.c.l.b16 %v35
    %v68 = vpack.c.b16 %v65, %v64
    %v69 = vpack.c.b16 %v67, %v66
    %v72 = vunpack.c.l.b16 %v30
    %v73 = vunpack.c.l.b16 %v31
    %v74 = vpack.c.b16 %v73, %v72
    %vm76 = vcmask 130048
    %v78 = vsel %vm76, %v68, 0
    %v81 = vsel %vm76, %v69, 0
    %83 = vmatpush.bf16.msra.mxu0 0
    %84 = vmatpush.bf16.msra.mxu0 0
    %85 = vmatpush.bf16.msra.mxu0 0
    %86 = vmatpush.bf16.msra.mxu0 0
    %87 = vmatpush.bf16.msra.mxu0 0
    %88 = vmatpush.bf16.msra.mxu0 0
    %89 = vmatpush.bf16.msra.mxu0 0
    %90 = vmatpush.bf16.msra.mxu0 %v74
    %91 = vmatmul.bf16.gmra.mxu0 %v78
    %v92 = vpop.f32.mrf.mxu0
    %v93 = vadd.f32 %v43, %v92
    %v94 = vpop.f32.mrf.mxu0
    %v95 = vadd.f32 %v48, %v94
    %96 = vmatmul.bf16.gmra.mxu0 %v81
    %v97 = vpop.f32.mrf.mxu0
    %v98 = vadd.f32 %v53, %v97
    %v99 = vpop.f32.mrf.mxu0
    %v100 = vadd.f32 %v58, %v99
    %101 = vdwg.mxu0
    %v102 = vmax.f32 %v93, 0.0
    %v103 = vmax.f32 %v95, 0.0
    %v104 = vmax.f32 %v98, 0.0
    %v105 = vmax.f32 %v100, 0.0
    %v106 = vpack.c.bf16 %v103, %v102
    %v107 = vpack.c.bf16 %v105, %v104
    %v108 = vld [vmem:[%s3] sm:$0xf]
    %v109 = vld [vmem:[%s3 + $0x4] sm:$0xf]
    %v110 = vld [vmem:[%s3 + $0x8] sm:$0xf]
    %v111 = vld [vmem:[%s3 + $0xc] sm:$0xf]
    %v112 = vld [vmem:[%s4] sm:$0xff]
    %v113 = vld [vmem:[%s4 + $0x8] sm:$0xff]
    %v114 = vld [vmem:[%s4 + $0x10] sm:$0xff]
    %v115 = vld [vmem:[%s4 + $0x18] sm:$0xff]
    %117 = vset.pattern.permute.xlu0 0
    %118 = vperm.xlu0 %117, %v112
    %v119 = vpop.permute.xlu0 %118
    %122 = vset.pattern.permute.xlu0 0
    %123 = vperm.xlu0 %122, %v113
    %v124 = vpop.permute.xlu0 %123
    %127 = vset.pattern.permute.xlu0 0
    %128 = vperm.xlu0 %127, %v114
    %v129 = vpop.permute.xlu0 %128
    %132 = vset.pattern.permute.xlu0 0
    %133 = vperm.xlu0 %132, %v115
    %v134 = vpop.permute.xlu0 %133
    %v140 = vunpack.c.l.b16 %v108
    %v141 = vunpack.c.l.b16 %v109
    %v142 = vunpack.c.l.b16 %v110
    %v143 = vunpack.c.l.b16 %v111
    %v144 = vpack.c.b16 %v141, %v140
    %v145 = vpack.c.b16 %v143, %v142
    %vm146 = vcmask 261120
    %v148 = vsel %vm146, %v144, 0
    %v151 = vsel %vm146, %v145, 0
    %153 = vmatpush.bf16.msra.mxu0 0
    %154 = vmatpush.bf16.msra.mxu0 0
    %155 = vmatpush.bf16.msra.mxu0 0
    %156 = vmatpush.bf16.msra.mxu0 0
    %157 = vmatpush.bf16.msra.mxu0 0
    %158 = vmatpush.bf16.msra.mxu0 0
    %159 = vmatpush.bf16.msra.mxu0 %v107
    %160 = vmatpush.bf16.msra.mxu0 %v106
    %161 = vmatmul.bf16.gmra.mxu0 %v148
    %v162 = vpop.f32.mrf.mxu0
    %v163 = vadd.f32 %v119, %v162
    %v164 = vpop.f32.mrf.mxu0
    %v165 = vadd.f32 %v124, %v164
    %166 = vmatmul.bf16.gmra.mxu0 %v151
    %v167 = vpop.f32.mrf.mxu0
    %v168 = vadd.f32 %v129, %v167
    %v169 = vpop.f32.mrf.mxu0
    %v170 = vadd.f32 %v134, %v169
    %171 = vdwg.mxu0
    %v172 = vmax.f32 %v163, 0.0
    %v173 = vmax.f32 %v165, 0.0
    %v174 = vmax.f32 %v168, 0.0
    %v175 = vmax.f32 %v170, 0.0
    %v176 = vpack.c.bf16 %v173, %v172
    %v177 = vpack.c.bf16 %v175, %v174
    %v178 = vld [vmem:[%s5] sm:$0xf]
    %v179 = vld [vmem:[%s6] sm:$0xff]
    %181 = vset.pattern.permute.xlu0 0
    %182 = vperm.xlu0 %181, %v179
    %v183 = vpop.permute.xlu0 %182
    %v186 = vsel %vm146, %v178, 0
    %188 = vmatpush.bf16.msra.mxu0 0
    %189 = vmatpush.bf16.msra.mxu0 0
    %190 = vmatpush.bf16.msra.mxu0 0
    %191 = vmatpush.bf16.msra.mxu0 0
    %192 = vmatpush.bf16.msra.mxu0 0
    %193 = vmatpush.bf16.msra.mxu0 0
    %194 = vmatpush.bf16.msra.mxu0 %v177
    %195 = vmatpush.bf16.msra.mxu0 %v176
    %196 = vmatmul.bf16.gmra.mxu0 %v186
    %v197 = vpop.f32.mrf.mxu0
    %v198 = vadd.f32 %v183, %v197
    %v199 = vpop.f32.mrf.mxu0
    %200 = vdwg.mxu0
    %vm201 = vcmask 15360
    %202 = vst.msk [vmem:[%s7] sm:$0xff] %vm201, %v198
    %v203 = vlaneseq
    %v204 = vshrl.u32 %v203, 7
    %v205 = vsel %vm201, %v198, -inf
    %v206 = vrot.slane %v205, 4
    %v207 = vmax.f32 %v205, %v206
    %v208 = vrot.slane %v207, 2
    %v209 = vmax.f32 %v207, %v208
    %v210 = vrot.slane %v209, 1
    %v211 = vmax.f32 %v209, %v210
    %vm212 = vcmp.eq.f32.partialorder %v198, %v211
    %v213 = vsel %vm212, %v204, 8
    %v214 = vsel %vm201, %v213, 2147483647
    %v215 = vrot.slane %v214, 4
    %vm216 = vcmp.lt.s32.totalorder %v214, %v215
    %v217 = vsel %vm216, %v214, %v215
    %v218 = vrot.slane %v217, 2
    %vm219 = vcmp.lt.s32.totalorder %v217, %v218
    %v220 = vsel %vm219, %v217, %v218
    %v221 = vrot.slane %v220, 1
    %vm222 = vcmp.lt.s32.totalorder %v220, %v221
    %v223 = vsel %vm222, %v220, %v221
    %vm224 = vcmask 8192
    %225 = vst.msk [vmem:[#allocation2] sm:$0x1] %vm224, %v223
    // Predicated region
    $region30: #{dqn_forward.1} parent=1 // pred_check
      _
    $region31: #{dqn_forward.1} parent=1 // pred_check_branch
      %227 = sbr.rel (0) target = $region33
    $region32: #{dqn_forward.1} parent=1 // pred_region
      _
    $region33: #{dqn_forward.1} parent=1 // pred_fallthru
      _
    // Predicated region
    $region34: #{dqn_forward.1} parent=1 // pred_check
      _
    $region35: #{dqn_forward.1} parent=1 // pred_check_branch
      %229 = sbr.rel (0) target = $region37
    $region36: #{dqn_forward.1} parent=1 // pred_region
      %231 = vsyncadd [#allocation3], 0
      %s233 = sshll.u32 [#allocation2], 4
      %s234 = int_to_ptr.vmem [resolvable:$true] %s233
      %s235 = sshll.u32 %s8, 4
      %s236 = int_to_ptr.hbm [resolvable:$true] %s235
      %238 = dma.vmem_to_hbm [thread:$0]  %s234, 16, %s236, [#allocation3]
    $region37: #{dqn_forward.1} parent=1 // pred_fallthru
      _
    // Predicated region
    $region38: #{dqn_forward.1} parent=1 // pred_check
      _
    $region39: #{dqn_forward.1} parent=1 // pred_check_branch
      %240 = sbr.rel (0) target = $region41
    $region40: #{dqn_forward.1} parent=1 // pred_region
      _
    $region41: #{dqn_forward.1} parent=1 // pred_fallthru
      _
    // Predicated region
    $region42: #{dqn_forward.1} parent=1 // pred_check
      _
    $region43: #{dqn_forward.1} parent=1 // pred_check_branch
      %242 = sbr.rel (0) target = $region45
    $region44: #{dqn_forward.1} parent=1 // pred_region
      %244 = dma.done [#allocation3], 16
    $region45: #{dqn_forward.1} parent=1 // pred_fallthru
      _
    %245 = vsyncpa [#allocation3], 1

</llo_original>
